<compile_context>
chip_gen: v6e
topology: v6e:2x2x1
jax: 0.10.0
libtpu: 0.0.40
codegen_flags: <defaults>
</compile_context>

<pallas_src>
import functools

import jax
import jax.numpy as jnp
from jax.experimental import pallas as pl
from jax.experimental.pallas import tpu as pltpu


def _global_attention_kernel(tile_n, num_graphs,
                             x_ref, batch_ref, wg_ref, bg_ref, wn_ref, bn_ref,
                             out_ref, logits_ref, m_ref, l_ref):
    t = pl.program_id(0)

    @pl.when(t == 0)
    def _init():
        out_ref[...] = jnp.zeros_like(out_ref)
        m_ref[...] = jnp.full_like(m_ref, -jnp.inf)   # running per-graph max
        l_ref[...] = jnp.zeros_like(l_ref)            # running per-graph sum of exp

    x = x_ref[...]                                    # [TN, Fp] bf16
    batch_row = batch_ref[...]                        # [1, TN] int32 graph id per node

    # One-hot membership: graphs on sublanes, nodes on lanes. member[b, n] = (batch[n]==b).
    # Padded nodes carry graph id == num_graphs and therefore match no row.
    seg_iota = jax.lax.broadcasted_iota(jnp.int32, (num_graphs, tile_n), 0)
    member = seg_iota == batch_row                    # [B, TN] bool
    member_f = member.astype(jnp.float32)

    # gate_nn(x) as a lane-dense row: bf16 [1, Fp] x bf16 [TN, Fp]^T -> f32 [1, TN]
    logits = jax.lax.dot_general(
        wg_ref[...], x, (((1,), (1,)), ((), ())),
        preferred_element_type=jnp.float32) + bg_ref[...]
    # Raw logits slab; softmax normalization happens in the (cheap) JAX epilogue.
    logits_ref[...] = logits

    # ---- online per-graph (max, sum) update, all f32 ----
    m_old = m_ref[...]                                # [B, 1]
    l_old = l_ref[...]                                # [B, 1]
    masked = jnp.where(member, logits, -1e30)         # scalar fill, no -1e30 tensor
    tile_max = jnp.max(masked, axis=1, keepdims=True) # [B, 1]
    m_new = jnp.maximum(m_old, tile_max)
    rescale = jnp.exp(m_old - m_new)                  # exp(-inf) = 0 on the first tile
    # Gather the running max back to nodes on the MXU (f32): [B,1] x [B,TN] -> [1,TN]
    node_max = jax.lax.dot_general(m_new, member_f, (((0,), (0,)), ((), ())),
                                   preferred_element_type=jnp.float32)
    e = jnp.exp(logits - node_max)                    # [1, TN]; pad lanes stay finite
    # Per-graph partial sum on the MXU (f32): [B,TN] x [1,TN]^T -> [B,1]
    tile_sum = jax.lax.dot_general(member_f, e, (((1,), (1,)), ((), ())),
                                   preferred_element_type=jnp.float32)
    m_ref[...] = m_new                                # full-block stores
    l_ref[...] = l_old * rescale + tile_sum

    # ---- nn(x) + un-normalized attention-weighted scatter_add (bf16 MXU feeds) ----
    xt = jnp.dot(x, wn_ref[...], preferred_element_type=jnp.float32) + bn_ref[...]  # [TN,Fp] f32
    w = (member_f * e).astype(jnp.bfloat16)           # [B, TN]; pad columns exactly 0
    contrib = jax.lax.dot_general(w, xt.astype(jnp.bfloat16), (((1,), (0,)), ((), ())),
                                  preferred_element_type=jnp.float32)               # [B, Fp]
    out_ref[...] = out_ref[...] * rescale + contrib   # flash-style rescale + accumulate

    @pl.when(t == pl.num_programs(0) - 1)
    def _finalize():
        denom = l_ref[...] + 1e-16
        inv = pl.reciprocal(denom, approx=True)       # EUP slot
        inv = inv * (2.0 - denom * inv)               # one Newton step -> ~f32 accurate
        out_ref[...] = out_ref[...] * inv


def my_global_attention(x, batch, wg, bg, wn, b_n, num_graphs, *, block_rows=1024):
    """x: [N, F] f32, batch: [N] int32 graph ids in [0, B).  Returns (out [B,F], gate [N,1])."""
    n, f = x.shape
    f_pad = pl.cdiv(f, 128) * 128
    block_rows = pl.cdiv(block_rows, 128) * 128
    tile_n = min(block_rows, pl.cdiv(n, 128) * 128)    # rows per grid step, multiple of 128
    n_pad = pl.cdiv(n, tile_n) * tile_n
    num_tiles = n_pad // tile_n

    # Pad nodes / features.  x lives in HBM as bf16 (halves the dominant DMA stream);
    # padded rows get graph id == num_graphs -> they match no one-hot row.
    x_p = jnp.pad(x, ((0, n_pad - n), (0, f_pad - f))).astype(jnp.bfloat16)
    batch_p = jnp.pad(batch.astype(jnp.int32), (0, n_pad - n),
                      constant_values=num_graphs).reshape(1, n_pad)
    wg_p = jnp.pad(wg.reshape(1, f), ((0, 0), (0, f_pad - f))).astype(jnp.bfloat16)
    bg_p = bg.reshape(1, 1).astype(jnp.float32)
    wn_p = jnp.pad(wn, ((0, f_pad - f), (0, f_pad - f))).astype(jnp.bfloat16)
    bn_p = jnp.pad(b_n.reshape(1, f), ((0, 0), (0, f_pad - f))).astype(jnp.float32)

    kernel = functools.partial(_global_attention_kernel, tile_n, num_graphs)

    out_p, logits_row, m_out, l_out = pl.pallas_call(
        kernel,
        out_shape=(jax.ShapeDtypeStruct((num_graphs, f_pad), jnp.float32),
                   jax.ShapeDtypeStruct((1, n_pad), jnp.float32),
                   jax.ShapeDtypeStruct((num_graphs, 1), jnp.float32),
                   jax.ShapeDtypeStruct((num_graphs, 1), jnp.float32)),
        grid_spec=pltpu.PrefetchScalarGridSpec(
            num_scalar_prefetch=0,
            grid=(num_tiles,),                                    # single pass over node tiles
            in_specs=[
                pl.BlockSpec((tile_n, f_pad), lambda t: (t, 0)),  # x tile (bf16)
                pl.BlockSpec((1, tile_n), lambda t: (0, t)),      # batch ids (lane-dense)
                pl.BlockSpec((1, f_pad), lambda t: (0, 0)),       # gate_nn weight row (bf16)
                pl.BlockSpec((1, 1), lambda t: (0, 0)),           # gate_nn bias
                pl.BlockSpec((f_pad, f_pad), lambda t: (0, 0)),   # nn weight (bf16)
                pl.BlockSpec((1, f_pad), lambda t: (0, 0)),       # nn bias
            ],
            out_specs=(
                # Resident [B, Fp] accumulator: same block for the whole grid.
                pl.BlockSpec((num_graphs, f_pad), lambda t: (0, 0)),
                # Lane-dense raw gate-logits slab, one block per node tile.
                pl.BlockSpec((1, tile_n), lambda t: (0, t)),
                # Resident per-graph running max / sum (flushed once at the end).
                pl.BlockSpec((num_graphs, 1), lambda t: (0, 0)),
                pl.BlockSpec((num_graphs, 1), lambda t: (0, 0)),
            ),
        ),
        compiler_params=pltpu.CompilerParams(
            dimension_semantics=("arbitrary",),       # stats / accumulator carry across tiles
            vmem_limit_bytes=64 * 1024 * 1024,
        ),
    )(x_p, batch_p, wg_p, bg_p, wn_p, bn_p)

    out = out_p[:, :f]
    # Cheap O(N) epilogue: normalize the raw logits with the final per-graph stats.
    m_b = m_out[:, 0][batch]
    l_b = l_out[:, 0][batch]
    gate = (jnp.exp(logits_row[0, :n] - m_b) / (l_b + 1e-16)).reshape(n, 1)
    return out, gate


def _reference_f32(x, batch, wg, bg, wn, bn, num_graphs):
    """Pure-JAX f32 reference of the PyTorch forward."""
    logits = x @ wg + bg                                        # [N, 1]
    xt = x @ wn + bn                                            # [N, F]
    seg_max = jax.ops.segment_max(logits, batch, num_segments=num_graphs)
    e = jnp.exp(logits - seg_max[batch])
    seg_sum = jax.ops.segment_sum(e, batch, num_segments=num_graphs)
    gate = e / (seg_sum[batch] + 1e-16)
    out = jax.ops.segment_sum(gate * xt, batch, num_segments=num_graphs)
    return out, gate


def _reference_bf16(x, batch, wg, bg, wn, bn, num_graphs):
    """Reference matching the kernel's bf16-MXU-feed / f32-accumulate arithmetic."""
    xb = x.astype(jnp.bfloat16)
    logits = jnp.dot(xb, wg.astype(jnp.bfloat16), preferred_element_type=jnp.float32) + bg
    xt = jnp.dot(xb, wn.astype(jnp.bfloat16), preferred_element_type=jnp.float32) + bn
    seg_max = jax.ops.segment_max(logits, batch, num_segments=num_graphs)
    e = jnp.exp(logits - seg_max[batch])
    seg_sum = jax.ops.segment_sum(e, batch, num_segments=num_graphs)
    gate = e / (seg_sum[batch] + 1e-16)
    w = e.astype(jnp.bfloat16).astype(jnp.float32)
    xtb = xt.astype(jnp.bfloat16).astype(jnp.float32)
    out = jax.ops.segment_sum(w * xtb, batch, num_segments=num_graphs) / (seg_sum + 1e-16)
    return out, gate


if __name__ == "__main__":
    N, F, B = 16, 32, 4  # nodes, features, graphs (batch[-1]+1 == B)

    key = jax.random.PRNGKey(0)
    kx, kwg, kbg, kwn, kbn = jax.random.split(key, 5)

    x = jax.random.normal(kx, (N, F), dtype=jnp.float32)
    # sorted graph assignment, last entry == B-1 (matches `size = batch[-1]+1`)
    batch = jnp.array([0] * 5 + [1] * 3 + [2] * 4 + [3] * 4, dtype=jnp.int32)

    # Deterministic synthetic weights, PyTorch-Linear-style U(-1/sqrt(F), 1/sqrt(F)).
    # Stored as [in, out] so the kernel does x @ W (equivalent to torch's x @ W.T).
    bound = 1.0 / (F ** 0.5)
    wg = jax.random.uniform(kwg, (F, 1), jnp.float32, -bound, bound)   # gate_nn weight
    bg = jax.random.uniform(kbg, (1, 1), jnp.float32, -bound, bound)   # gate_nn bias
    wn = jax.random.uniform(kwn, (F, F), jnp.float32, -bound, bound)   # nn weight
    bn = jax.random.uniform(kbn, (1, F), jnp.float32, -bound, bound)   # nn bias

    out, gate = my_global_attention(x, batch, wg, bg, wn, bn, B)
    out = jax.block_until_ready(out)
    gate = jax.block_until_ready(gate)

    assert out.shape == (B, F) and gate.shape == (N, 1)

    # Tight check against a reference that mirrors the kernel's bf16 MXU feeds.
    out_b, gate_b = _reference_bf16(x, batch, wg, bg, wn, bn, B)
    assert jnp.allclose(gate, gate_b, atol=2e-5, rtol=1e-3), float(jnp.max(jnp.abs(gate - gate_b)))
    assert jnp.allclose(out, out_b, atol=2e-3, rtol=2e-3), float(jnp.max(jnp.abs(out - out_b)))

    # Looser check against the full-f32 reference (bf16 MXU inputs -> ~1e-3 relative).
    out_r, gate_r = _reference_f32(x, batch, wg, bg, wn, bn, B)
    assert jnp.allclose(gate, gate_r, atol=2e-2, rtol=2e-2), float(jnp.max(jnp.abs(gate - gate_r)))
    assert jnp.allclose(out, out_r, atol=2e-2, rtol=2e-2), float(jnp.max(jnp.abs(out - out_r)))

    print("KERNEL_OK")
</pallas_src>

<mosaic_0001>
module attributes {stable_mosaic.version = 11 : i64} {
  func.func @_global_attention_kernel(%arg0: i32, %arg1: memref<128x128xbf16, #tpu.memory_space<vmem>>, %arg2: memref<1x128xi32, #tpu.memory_space<vmem>>, %arg3: memref<1x128xbf16, #tpu.memory_space<vmem>>, %arg4: memref<1x1xf32, #tpu.memory_space<vmem>>, %arg5: memref<128x128xbf16, #tpu.memory_space<vmem>>, %arg6: memref<1x128xf32, #tpu.memory_space<vmem>>, %arg7: memref<4x128xf32, #tpu.memory_space<vmem>>, %arg8: memref<1x128xf32, #tpu.memory_space<vmem>>, %arg9: memref<4x1xf32, #tpu.memory_space<vmem>>, %arg10: memref<4x1xf32, #tpu.memory_space<vmem>>) attributes {dimension_semantics = [#tpu.dimension_semantics<arbitrary>], iteration_bounds = array<i64: 1>, scalar_prefetch = 0 : i64, scratch_operands = 0 : i64, tpu.core_type = #tpu.core_type<tc>, window_params = [{transform_indices = @transform_0, window_bounds = array<i64: 128, 128>}, {transform_indices = @transform_1, window_bounds = array<i64: 1, 128>}, {pipeline_mode = #tpu.pipeline_mode<synchronous>, transform_indices = @transform_2, window_bounds = array<i64: 1, 128>}, {pipeline_mode = #tpu.pipeline_mode<synchronous>, transform_indices = @transform_3, window_bounds = array<i64: 1, 1>}, {pipeline_mode = #tpu.pipeline_mode<synchronous>, transform_indices = @transform_4, window_bounds = array<i64: 128, 128>}, {pipeline_mode = #tpu.pipeline_mode<synchronous>, transform_indices = @transform_5, window_bounds = array<i64: 1, 128>}, {pipeline_mode = #tpu.pipeline_mode<synchronous>, transform_indices = @transform_6, window_bounds = array<i64: 4, 128>}, {transform_indices = @transform_7, window_bounds = array<i64: 1, 128>}, {pipeline_mode = #tpu.pipeline_mode<synchronous>, transform_indices = @transform_8, window_bounds = array<i64: 4, 1>}, {pipeline_mode = #tpu.pipeline_mode<synchronous>, transform_indices = @transform_9, window_bounds = array<i64: 4, 1>}]} {
    %c0_i32 = arith.constant 0 : i32
    %0 = arith.cmpi eq, %arg0, %c0_i32 : i32
    %1 = arith.extui %0 : i1 to i32
    %c0_i32_0 = arith.constant 0 : i32
    %2 = arith.cmpi ne, %1, %c0_i32_0 : i32
    scf.if %2 {
      %cst_34 = arith.constant 0.000000e+00 : f32
      %53 = vector.broadcast %cst_34 : f32 to vector<4x128xf32>
      %c0_35 = arith.constant 0 : index
      %c0_36 = arith.constant 0 : index
      %54 = vector.load %arg7[%c0_35, %c0_36] : memref<4x128xf32, #tpu.memory_space<vmem>>, vector<4x128xf32>
      tpu.vector_store %arg7[%c0_35, %c0_36], %53 {strides = array<i32>} : memref<4x128xf32, #tpu.memory_space<vmem>>, vector<4x128xf32>,
      %cst_37 = arith.constant 0xFF800000 : f32
      %55 = vector.broadcast %cst_37 : f32 to vector<4x1xf32>
      %c0_38 = arith.constant 0 : index
      %c0_39 = arith.constant 0 : index
      %56 = vector.load %arg9[%c0_38, %c0_39] : memref<4x1xf32, #tpu.memory_space<vmem>>, vector<4x1xf32>
      tpu.vector_store %arg9[%c0_38, %c0_39], %55 {strides = array<i32>} : memref<4x1xf32, #tpu.memory_space<vmem>>, vector<4x1xf32>,
      %cst_40 = arith.constant 0.000000e+00 : f32
      %57 = vector.broadcast %cst_40 : f32 to vector<4x1xf32>
      %c0_41 = arith.constant 0 : index
      %c0_42 = arith.constant 0 : index
      %58 = vector.load %arg10[%c0_41, %c0_42] : memref<4x1xf32, #tpu.memory_space<vmem>>, vector<4x1xf32>
      tpu.vector_store %arg10[%c0_41, %c0_42], %57 {strides = array<i32>} : memref<4x1xf32, #tpu.memory_space<vmem>>, vector<4x1xf32>,
    } else {
    }
    %c0 = arith.constant 0 : index
    %c0_1 = arith.constant 0 : index
    %3 = vector.load %arg1[%c0, %c0_1] : memref<128x128xbf16, #tpu.memory_space<vmem>>, vector<128x128xbf16>
    %c0_2 = arith.constant 0 : index
    %c0_3 = arith.constant 0 : index
    %4 = vector.load %arg2[%c0_2, %c0_3] : memref<1x128xi32, #tpu.memory_space<vmem>>, vector<1x128xi32>
    %5 = tpu.iota {dimensions = array<i32: 0>} : vector<4x128xi32>
    %6 = vector.broadcast %4 : vector<1x128xi32> to vector<4x128xi32>
    %7 = arith.cmpi eq, %5, %6 : vector<4x128xi32>
    %8 = arith.extui %7 : vector<4x128xi1> to vector<4x128xi32>
    %9 = arith.sitofp %8 : vector<4x128xi32> to vector<4x128xf32>
    %c0_4 = arith.constant 0 : index
    %c0_5 = arith.constant 0 : index
    %10 = vector.load %arg3[%c0_4, %c0_5] : memref<1x128xbf16, #tpu.memory_space<vmem>>, vector<1x128xbf16>
    %cst = arith.constant dense<0.000000e+00> : vector<1x128xf32>
    %11 = tpu.matmul %10, %3, %cst {dimension_numbers = #tpu.dot_dimension_numbers<[1], [1], [0], [0], [0, 0, 1, 0], [], []>} : vector<1x128xbf16>, vector<128x128xbf16>, vector<1x128xf32> -> vector<1x128xf32>
    %c0_6 = arith.constant 0 : index
    %c0_7 = arith.constant 0 : index
    %12 = vector.load %arg4[%c0_6, %c0_7] : memref<1x1xf32, #tpu.memory_space<vmem>>, vector<1x1xf32>
    %13 = vector.broadcast %12 : vector<1x1xf32> to vector<1x128xf32>
    %14 = arith.addf %11, %13 : vector<1x128xf32>
    %c0_8 = arith.constant 0 : index
    %c0_9 = arith.constant 0 : index
    %15 = vector.load %arg8[%c0_8, %c0_9] : memref<1x128xf32, #tpu.memory_space<vmem>>, vector<1x128xf32>
    tpu.vector_store %arg8[%c0_8, %c0_9], %14 {strides = array<i32>} : memref<1x128xf32, #tpu.memory_space<vmem>>, vector<1x128xf32>,
    %c0_10 = arith.constant 0 : index
    %c0_11 = arith.constant 0 : index
    %16 = vector.load %arg9[%c0_10, %c0_11] : memref<4x1xf32, #tpu.memory_space<vmem>>, vector<4x1xf32>
    %c0_12 = arith.constant 0 : index
    %c0_13 = arith.constant 0 : index
    %17 = vector.load %arg10[%c0_12, %c0_13] : memref<4x1xf32, #tpu.memory_space<vmem>>, vector<4x1xf32>
    %cst_14 = arith.constant -1.000000e+30 : f32
    %18 = vector.shape_cast %14 : vector<1x128xf32> to vector<1x128xf32>
    %19 = vector.broadcast %18 : vector<1x128xf32> to vector<4x128xf32>
    %20 = vector.broadcast %cst_14 : f32 to vector<4x128xf32>
    %21 = arith.select %7, %19, %20 : vector<4x128xi1>, vector<4x128xf32>
    %cst_15 = arith.constant dense<0xFF800000> : vector<4xf32>
    %22 = vector.multi_reduction <maximumf>, %21, %cst_15 [1] : vector<4x128xf32> to vector<4xf32>
    %23 = vector.shape_cast %22 : vector<4xf32> to vector<4x1xf32>
    %24 = arith.maximumf %16, %23 : vector<4x1xf32>
    %25 = arith.subf %16, %24 : vector<4x1xf32>
    %26 = math.exp %25 : vector<4x1xf32>
    %cst_16 = arith.constant dense<0.000000e+00> : vector<1x128xf32>
    %27 = tpu.matmul %24, %9, %cst_16 {dimension_numbers = #tpu.dot_dimension_numbers<[0], [0], [1], [1], [0, 1, 1, 1], [], []>} : vector<4x1xf32>, vector<4x128xf32>, vector<1x128xf32> -> vector<1x128xf32>
    %28 = arith.subf %14, %27 : vector<1x128xf32>
    %29 = math.exp %28 : vector<1x128xf32>
    %cst_17 = arith.constant dense<0.000000e+00> : vector<4x1xf32>
    %30 = tpu.matmul %9, %29, %cst_17 {dimension_numbers = #tpu.dot_dimension_numbers<[1], [1], [0], [0], [0, 0, 1, 0], [], []>} : vector<4x128xf32>, vector<1x128xf32>, vector<4x1xf32> -> vector<4x1xf32>
    %c0_18 = arith.constant 0 : index
    %c0_19 = arith.constant 0 : index
    %31 = vector.load %arg9[%c0_18, %c0_19] : memref<4x1xf32, #tpu.memory_space<vmem>>, vector<4x1xf32>
    tpu.vector_store %arg9[%c0_18, %c0_19], %24 {strides = array<i32>} : memref<4x1xf32, #tpu.memory_space<vmem>>, vector<4x1xf32>,
    %32 = arith.mulf %17, %26 : vector<4x1xf32>
    %33 = arith.addf %32, %30 : vector<4x1xf32>
    %c0_20 = arith.constant 0 : index
    %c0_21 = arith.constant 0 : index
    %34 = vector.load %arg10[%c0_20, %c0_21] : memref<4x1xf32, #tpu.memory_space<vmem>>, vector<4x1xf32>
    tpu.vector_store %arg10[%c0_20, %c0_21], %33 {strides = array<i32>} : memref<4x1xf32, #tpu.memory_space<vmem>>, vector<4x1xf32>,
    %c0_22 = arith.constant 0 : index
    %c0_23 = arith.constant 0 : index
    %35 = vector.load %arg5[%c0_22, %c0_23] : memref<128x128xbf16, #tpu.memory_space<vmem>>, vector<128x128xbf16>
    %cst_24 = arith.constant dense<0.000000e+00> : vector<128x128xf32>
    %36 = tpu.matmul %3, %35, %cst_24 {dimension_numbers = #tpu.dot_dimension_numbers<[1], [0], [0], [1], [0, 0, 1, 1], [], []>} : vector<128x128xbf16>, vector<128x128xbf16>, vector<128x128xf32> -> vector<128x128xf32>
    %c0_25 = arith.constant 0 : index
    %c0_26 = arith.constant 0 : index
    %37 = vector.load %arg6[%c0_25, %c0_26] : memref<1x128xf32, #tpu.memory_space<vmem>>, vector<1x128xf32>
    %38 = vector.broadcast %37 : vector<1x128xf32> to vector<128x128xf32>
    %39 = arith.addf %36, %38 : vector<128x128xf32>
    %40 = vector.broadcast %29 : vector<1x128xf32> to vector<4x128xf32>
    %41 = arith.mulf %9, %40 : vector<4x128xf32>
    %42 = arith.truncf %41 : vector<4x128xf32> to vector<4x128xbf16>
    %43 = arith.truncf %39 : vector<128x128xf32> to vector<128x128xbf16>
    %cst_27 = arith.constant dense<0.000000e+00> : vector<4x128xf32>
    %44 = tpu.matmul %42, %43, %cst_27 {dimension_numbers = #tpu.dot_dimension_numbers<[1], [0], [0], [1], [0, 0, 1, 1], [], []>} : vector<4x128xbf16>, vector<128x128xbf16>, vector<4x128xf32> -> vector<4x128xf32>
    %c0_28 = arith.constant 0 : index
    %c0_29 = arith.constant 0 : index
    %45 = vector.load %arg7[%c0_28, %c0_29] : memref<4x128xf32, #tpu.memory_space<vmem>>, vector<4x128xf32>
    %46 = vector.broadcast %26 : vector<4x1xf32> to vector<4x128xf32>
    %47 = arith.mulf %45, %46 : vector<4x128xf32>
    %48 = arith.addf %47, %44 : vector<4x128xf32>
    %c0_30 = arith.constant 0 : index
    %c0_31 = arith.constant 0 : index
    %49 = vector.load %arg7[%c0_30, %c0_31] : memref<4x128xf32, #tpu.memory_space<vmem>>, vector<4x128xf32>
    tpu.vector_store %arg7[%c0_30, %c0_31], %48 {strides = array<i32>} : memref<4x128xf32, #tpu.memory_space<vmem>>, vector<4x128xf32>,
    %c0_i32_32 = arith.constant 0 : i32
    %50 = arith.cmpi eq, %arg0, %c0_i32_32 : i32
    %51 = arith.extui %50 : i1 to i32
    %c0_i32_33 = arith.constant 0 : i32
    %52 = arith.cmpi ne, %51, %c0_i32_33 : i32
    scf.if %52 {
      %c0_34 = arith.constant 0 : index
      %c0_35 = arith.constant 0 : index
      %53 = vector.load %arg10[%c0_34, %c0_35] : memref<4x1xf32, #tpu.memory_space<vmem>>, vector<4x1xf32>
      %cst_36 = arith.constant 1.000000e-16 : f32
      %54 = vector.broadcast %cst_36 : f32 to vector<4x1xf32>
      %55 = arith.addf %53, %54 : vector<4x1xf32>
      %56 = tpu.reciprocal %55 {approx = true} : vector<4x1xf32> -> vector<4x1xf32>
      %57 = arith.mulf %55, %56 : vector<4x1xf32>
      %cst_37 = arith.constant 2.000000e+00 : f32
      %58 = vector.broadcast %cst_37 : f32 to vector<4x1xf32>
      %59 = arith.subf %58, %57 : vector<4x1xf32>
      %60 = arith.mulf %56, %59 : vector<4x1xf32>
      %c0_38 = arith.constant 0 : index
      %c0_39 = arith.constant 0 : index
      %61 = vector.load %arg7[%c0_38, %c0_39] : memref<4x128xf32, #tpu.memory_space<vmem>>, vector<4x128xf32>
      %62 = vector.broadcast %60 : vector<4x1xf32> to vector<4x128xf32>
      %63 = arith.mulf %61, %62 : vector<4x128xf32>
      %c0_40 = arith.constant 0 : index
      %c0_41 = arith.constant 0 : index
      %64 = vector.load %arg7[%c0_40, %c0_41] : memref<4x128xf32, #tpu.memory_space<vmem>>, vector<4x128xf32>
      tpu.vector_store %arg7[%c0_40, %c0_41], %63 {strides = array<i32>} : memref<4x128xf32, #tpu.memory_space<vmem>>, vector<4x128xf32>,
    } else {
    }
    return
  }
  func.func @transform_0(%arg0: i32) -> (i32, i32) {
    %c0_i32 = arith.constant 0 : i32
    %c0_i32_0 = arith.constant 0 : i32
    return %arg0, %c0_i32 : i32, i32
  }
  func.func @transform_1(%arg0: i32) -> (i32, i32) {
    %c0_i32 = arith.constant 0 : i32
    %c0_i32_0 = arith.constant 0 : i32
    return %c0_i32, %arg0 : i32, i32
  }
  func.func @transform_2(%arg0: i32) -> (i32, i32) {
    %c0_i32 = arith.constant 0 : i32
    %c0_i32_0 = arith.constant 0 : i32
    %c0_i32_1 = arith.constant 0 : i32
    return %c0_i32, %c0_i32_0 : i32, i32
  }
  func.func @transform_3(%arg0: i32) -> (i32, i32) {
    %c0_i32 = arith.constant 0 : i32
    %c0_i32_0 = arith.constant 0 : i32
    %c0_i32_1 = arith.constant 0 : i32
    return %c0_i32, %c0_i32_0 : i32, i32
  }
  func.func @transform_4(%arg0: i32) -> (i32, i32) {
    %c0_i32 = arith.constant 0 : i32
    %c0_i32_0 = arith.constant 0 : i32
    %c0_i32_1 = arith.constant 0 : i32
    return %c0_i32, %c0_i32_0 : i32, i32
  }
  func.func @transform_5(%arg0: i32) -> (i32, i32) {
    %c0_i32 = arith.constant 0 : i32
    %c0_i32_0 = arith.constant 0 : i32
    %c0_i32_1 = arith.constant 0 : i32
    return %c0_i32, %c0_i32_0 : i32, i32
  }
  func.func @transform_6(%arg0: i32) -> (i32, i32) {
    %c0_i32 = arith.constant 0 : i32
    %c0_i32_0 = arith.constant 0 : i32
    %c0_i32_1 = arith.constant 0 : i32
    return %c0_i32, %c0_i32_0 : i32, i32
  }
  func.func @transform_7(%arg0: i32) -> (i32, i32) {
    %c0_i32 = arith.constant 0 : i32
    %c0_i32_0 = arith.constant 0 : i32
    return %c0_i32, %arg0 : i32, i32
  }
  func.func @transform_8(%arg0: i32) -> (i32, i32) {
    %c0_i32 = arith.constant 0 : i32
    %c0_i32_0 = arith.constant 0 : i32
    %c0_i32_1 = arith.constant 0 : i32
    return %c0_i32, %c0_i32_0 : i32, i32
  }
  func.func @transform_9(%arg0: i32) -> (i32, i32) {
    %c0_i32 = arith.constant 0 : i32
    %c0_i32_0 = arith.constant 0 : i32
    %c0_i32_1 = arith.constant 0 : i32
    return %c0_i32, %c0_i32_0 : i32, i32
  }
}

</mosaic_0001>

<llo_original>
// kernel: tpu_custom_call.1
$region0: #{tpu_custom_call.1}
  #allocation0 [shape = 'u32[]', space=smem, size = 0x4, offset = 0x4, fixed_abs, tag = 'smem constant byte address 0x4 - core index']
  #allocation1 [shape = 'u32[144,128]{1,0:T(1,128)}', space=vmem, size = 0x12000, scoped, tag = 'internal scratch']
  #allocation2 [shape = 'f32[1,1]{1,0:T(1,128)S(1)}', space=vmem, size = 0x200, scoped, tag = 'scoped memory for tpu_custom_call.1']
  %s0 = inlined_call_operand.hbm [shape: bf16[128,128], index: 0, kind: input, shape index: {}]
  %s1 = inlined_call_operand.vmem [shape: s32[1,128], index: 1, kind: input, shape index: {}]
  %s2 = inlined_call_operand.vmem [shape: bf16[1,128], index: 2, kind: input, shape index: {}]
  %s3 = inlined_call_operand.<no memory space> [shape: f32[1,1], index: 3, kind: input, shape index: {}]
  %s4 = inlined_call_operand.hbm [shape: bf16[128,128], index: 4, kind: input, shape index: {}]
  %s5 = inlined_call_operand.vmem [shape: f32[1,128], index: 5, kind: input, shape index: {}]
  %s6 = inlined_call_operand.hbm [shape: f32[4,128], index: 6, kind: output, shape index: {0}]
  %s7 = inlined_call_operand.hbm [shape: f32[1,128], index: 7, kind: output, shape index: {1}]
  %s8 = inlined_call_operand.vmem [shape: f32[4,1], index: 8, kind: output, shape index: {2}]
  %s9 = inlined_call_operand.vmem [shape: f32[4,1], index: 9, kind: output, shape index: {3}]
  %10 = xla_tuple %s6, %s7, %s8, %s9
  %s11 = sld [smem:[#allocation0]]
  $region74: #{tpu_custom_call.1} parent=0
    _
  %s13 = ssub.s32 1, %s11
  %s14 = scalar_select 0, %s13, %s11
  %v15 = vstv %s3
  %16 = vst [vmem:[#allocation2] sm:$0x1] %v15
  $region1: #{tpu_custom_call.1} parent=0
    #allocation3 [shape = 'u8[32768]{0}', space=vmem, size = 0x8000, scoped, tag = 'input window, operand 0, single buffered']
    #allocation4 [shape = 's32[1]{0}', space=sflag, size = 0x4, scoped, tag = 'scoped memory for tpu_custom_call.1']
    #allocation5 [shape = 's32[1]{0}', space=sflag, size = 0x4, scoped, tag = 'scoped memory for tpu_custom_call.1']
    #allocation6 [shape = 'u8[32768]{0}', space=vmem, size = 0x8000, scoped, tag = 'input window, operand 4, single buffered']
    #allocation7 [shape = 's32[1]{0}', space=sflag, size = 0x4, scoped, tag = 'scoped memory for tpu_custom_call.1']
    #allocation8 [shape = 'u8[2048]{0}', space=vmem, size = 0x800, scoped, tag = 'output window, operand 0, single buffered']
    #allocation9 [shape = 'u8[512]{0}', space=vmem, size = 0x400, scoped, tag = 'output window, operand 1, single buffered']
    #allocation10 [shape = 's32[1]{0}', space=sflag, size = 0x4, scoped, tag = 'scoped memory for tpu_custom_call.1']
    %17 = vsyncpa [#allocation4], 0
    %18 = vsyncpa [#allocation7], 0
    %19 = vsyncpa [#allocation5], 0
    %20 = vsyncpa [#allocation10], 0
    // Predicated region
    $region2: #{tpu_custom_call.1} parent=1 // pred_check
      _
    $region3: #{tpu_custom_call.1} parent=1 // pred_check_branch
      %22 = sbr.rel (0) target = $region5
    $region4: #{tpu_custom_call.1} parent=1 // pred_region
      %s24 = ssub.s32 1024, 1024
      %25 = vsyncadd [#allocation4], %s24
      %s26 = sshll.u32 [#allocation3], 4
      %s27 = int_to_ptr.vmem [resolvable:$true] %s26
      %32 = dma.hbm_to_vmem [thread:$0]  %s0, 1024, %s27, [#allocation4], 64, 64, 4
    $region5: #{tpu_custom_call.1} parent=1 // pred_fallthru
      _
    // Predicated region
    $region6: #{tpu_custom_call.1} parent=1 // pred_check
      _
    $region7: #{tpu_custom_call.1} parent=1 // pred_check_branch
      %34 = sbr.rel (0) target = $region9
    $region8: #{tpu_custom_call.1} parent=1 // pred_region
      _
    $region9: #{tpu_custom_call.1} parent=1 // pred_fallthru
      _
    // Predicated region
    $region10: #{tpu_custom_call.1} parent=1 // pred_check
      _
    $region11: #{tpu_custom_call.1} parent=1 // pred_check_branch
      %36 = sbr.rel (0) target = $region13
    $region12: #{tpu_custom_call.1} parent=1 // pred_region
      _
    $region13: #{tpu_custom_call.1} parent=1 // pred_fallthru
      _
    // Predicated region
    $region14: #{tpu_custom_call.1} parent=1 // pred_check
      _
    $region15: #{tpu_custom_call.1} parent=1 // pred_check_branch
      %38 = sbr.rel (0) target = $region17
    $region16: #{tpu_custom_call.1} parent=1 // pred_region
      _
    $region17: #{tpu_custom_call.1} parent=1 // pred_fallthru
      _
    // Predicated region
    $region18: #{tpu_custom_call.1} parent=1 // pred_check
      _
    $region19: #{tpu_custom_call.1} parent=1 // pred_check_branch
      %40 = sbr.rel (0) target = $region21
    $region20: #{tpu_custom_call.1} parent=1 // pred_region
      %s42 = ssub.s32 1024, 1024
      %43 = vsyncadd [#allocation7], %s42
      %s44 = sshll.u32 [#allocation6], 4
      %s45 = int_to_ptr.vmem [resolvable:$true] %s44
      %50 = dma.hbm_to_vmem [thread:$0]  %s4, 1024, %s45, [#allocation7], 64, 64, 4
    $region21: #{tpu_custom_call.1} parent=1 // pred_fallthru
      _
    // Predicated region
    $region22: #{tpu_custom_call.1} parent=1 // pred_check
      _
    $region23: #{tpu_custom_call.1} parent=1 // pred_check_branch
      %52 = sbr.rel (0) target = $region25
    $region24: #{tpu_custom_call.1} parent=1 // pred_region
      _
    $region25: #{tpu_custom_call.1} parent=1 // pred_fallthru
      _
    // Predicated region
    $region26: #{tpu_custom_call.1} parent=1 // pred_check
      _
    $region27: #{tpu_custom_call.1} parent=1 // pred_check_branch
      %54 = sbr.rel (0) target = $region29
    $region28: #{tpu_custom_call.1} parent=1 // pred_region
      %55 = dma.done [#allocation4], 1024
    $region29: #{tpu_custom_call.1} parent=1 // pred_fallthru
      _
    // Predicated region
    $region30: #{tpu_custom_call.1} parent=1 // pred_check
      _
    $region31: #{tpu_custom_call.1} parent=1 // pred_check_branch
      %57 = sbr.rel (0) target = $region33
    $region32: #{tpu_custom_call.1} parent=1 // pred_region
      %58 = dma.done [#allocation7], 1024
    $region33: #{tpu_custom_call.1} parent=1 // pred_fallthru
      _
    %p60 = scmp.eq.s32.totalorder 0, 0
    // Predicated region
    $region34: #{tpu_custom_call.1} parent=1 // pred_check
      %p61 = pneg %p60
    $region35: #{tpu_custom_call.1} parent=1 // pred_check_branch
      %63 = sbr.rel (%p61) target = $region37
    $region36: #{tpu_custom_call.1} parent=1 // pred_region
      %64 = vst [vmem:[#allocation8] sm:$0xf] 0.0
      %vm65 = vcmask 3072
      %66 = vst.msk [vmem:[%s8] sm:$0xf] %vm65, -inf
      %67 = vst.msk [vmem:[%s9] sm:$0xf] %vm65, 0.0
    $region37: #{tpu_custom_call.1} parent=1 // pred_fallthru
      _
    %v68 = vld [vmem:[#allocation3] sm:$0xf]
    %v69 = vld [vmem:[#allocation3 + $0x4] sm:$0xf]
    %v70 = vld [vmem:[#allocation3 + $0x8] sm:$0xf]
    %v71 = vld [vmem:[#allocation3 + $0xc] sm:$0xf]
    %v72 = vld [vmem:[#allocation3 + $0x10] sm:$0xf]
    %v73 = vld [vmem:[#allocation3 + $0x14] sm:$0xf]
    %v74 = vld [vmem:[#allocation3 + $0x18] sm:$0xf]
    %v75 = vld [vmem:[#allocation3 + $0x1c] sm:$0xf]
    %v76 = vld [vmem:[#allocation3 + $0x20] sm:$0xf]
    %v77 = vld [vmem:[#allocation3 + $0x24] sm:$0xf]
    %v78 = vld [vmem:[#allocation3 + $0x28] sm:$0xf]
    %v79 = vld [vmem:[#allocation3 + $0x2c] sm:$0xf]
    %v80 = vld [vmem:[#allocation3 + $0x30] sm:$0xf]
    %v81 = vld [vmem:[#allocation3 + $0x34] sm:$0xf]
    %v82 = vld [vmem:[#allocation3 + $0x38] sm:$0xf]
    %v83 = vld [vmem:[#allocation3 + $0x3c] sm:$0xf]
    %v84 = vld [vmem:[%s1] sm:$0x1]
    %v85 = vlaneseq
    %v86 = vshrl.u32 %v85, 7
    %v87 = vlaneseq
    %v88 = vshrl.u32 %v87, 7
    %v89 = vsub.s32 0, %v88
    %v90 = vrot.slane %v84, %v89
    %vm91 = vcmp.eq.s32.totalorder %v86, %v90
    %v92 = vsel %vm91, 1, 0
    %v93 = vcvt.s32.f32 %v92
    %v94 = vld [vmem:[%s2] sm:$0x1]
    %v95 = vld [vmem:[#allocation2] sm:$0x1]
    %97 = vset.pattern.permute.xlu0 0
    %98 = vperm.xlu0 %97, %v95
    %v99 = vpop.permute.xlu0 %98
    %v101 = vlaneseq
    %v102 = vshrl.u32 %v101, 7
    %v103 = vsub.s32 0, %v102
    %v104 = vrot.slane %v99, %v103
    %v121 = vunpack.c.l.b16 %v68
    %v122 = vunpack.c.l.b16 %v69
    %v123 = vunpack.c.l.b16 %v70
    %v124 = vunpack.c.l.b16 %v71
    %v125 = vunpack.c.l.b16 %v72
    %v126 = vunpack.c.l.b16 %v73
    %v127 = vunpack.c.l.b16 %v74
    %v128 = vunpack.c.l.b16 %v75
    %v129 = vunpack.c.l.b16 %v76
    %v130 = vunpack.c.l.b16 %v77
    %v131 = vunpack.c.l.b16 %v78
    %v132 = vunpack.c.l.b16 %v79
    %v133 = vunpack.c.l.b16 %v80
    %v134 = vunpack.c.l.b16 %v81
    %v135 = vunpack.c.l.b16 %v82
    %v136 = vunpack.c.l.b16 %v83
    %v137 = vpack.c.b16 %v122, %v121
    %v138 = vpack.c.b16 %v124, %v123
    %v139 = vpack.c.b16 %v126, %v125
    %v140 = vpack.c.b16 %v128, %v127
    %v141 = vpack.c.b16 %v130, %v129
    %v142 = vpack.c.b16 %v132, %v131
    %v143 = vpack.c.b16 %v134, %v133
    %v144 = vpack.c.b16 %v136, %v135
    %153 = vmatprep.subr.bf16.mxu0 0
    %154 = vmatpush1.bf16.xpose.msra.mxu0 %v144
    %155 = vmatprep.subr.bf16.mxu0 0
    %156 = vmatpush1.bf16.xpose.msra.mxu0 %v143
    %157 = vmatprep.subr.bf16.mxu0 0
    %158 = vmatpush1.bf16.xpose.msra.mxu0 %v142
    %159 = vmatprep.subr.bf16.mxu0 0
    %160 = vmatpush1.bf16.xpose.msra.mxu0 %v141
    %161 = vmatprep.subr.bf16.mxu0 0
    %162 = vmatpush1.bf16.xpose.msra.mxu0 %v140
    %163 = vmatprep.subr.bf16.mxu0 0
    %164 = vmatpush1.bf16.xpose.msra.mxu0 %v139
    %165 = vmatprep.subr.bf16.mxu0 0
    %166 = vmatpush1.bf16.xpose.msra.mxu0 %v138
    %167 = vmatprep.subr.bf16.mxu0 0
    %168 = vmatpush1.bf16.xpose.msra.mxu0 %v137
    %169 = vmatprep.subr.bf16.mxu0 0
    %170 = vmatpush2.bf16.xpose.msra.mxu0 0
    %171 = vmatprep.subr.bf16.mxu0 0
    %172 = vmatpush2.bf16.xpose.msra.mxu0 0
    %173 = vmatprep.subr.bf16.mxu0 0
    %174 = vmatpush2.bf16.xpose.msra.mxu0 0
    %175 = vmatprep.subr.bf16.mxu0 0
    %176 = vmatpush2.bf16.xpose.msra.mxu0 0
    %177 = vmatprep.subr.bf16.mxu0 0
    %178 = vmatpush2.bf16.xpose.msra.mxu0 0
    %179 = vmatprep.subr.bf16.mxu0 0
    %180 = vmatpush2.bf16.xpose.msra.mxu0 0
    %181 = vmatprep.subr.bf16.mxu0 0
    %182 = vmatpush2.bf16.xpose.msra.mxu0 0
    %183 = vmatprep.subr.bf16.mxu0 0
    %184 = vmatpush2.bf16.xpose.msra.mxu0 0
    %185 = vmatprep.mubr.bf16.mxu0 0
    %186 = vmatmul.mubr.bf16.gmra.mxu0 %v94
    %v187 = vpop.f32.mrf.mxu0
    %v188 = vadd.f32 %v104, %v187
    %v189 = vpop.f32.mrf.mxu0
    %v190 = vpop.f32.mrf.mxu0
    %v191 = vpop.f32.mrf.mxu0
    %192 = vdwg.mxu0
    %193 = vst [vmem:[#allocation9] sm:$0x1] %v188
    %v194 = vld [vmem:[%s8] sm:$0xf]
    %v195 = vld [vmem:[%s9] sm:$0xf]
    %v196 = vlaneseq
    %v197 = vshrl.u32 %v196, 7
    %v198 = vsub.s32 0, %v197
    %v199 = vrot.slane %v188, %v198
    %v200 = vsel %vm91, %v199, -1e+30
    %vm201 = vcmask 1043456
    %v202 = vsel %vm201, %v200, -inf
    %203 = vmax.xlane.f32.xlu0 %v202
    %v204 = vpop.xlane.xlu0 %203
    %v205 = vmax.f32 %v194, %v204
    %v206 = vsub.f32 %v194, %v205
    %v207 = vmul.f32 %v206, 1.442695
    %v208 = vpow.pop %v207
    %209 = vxpose.xlu0.b32.start [1/16] %v205, 128
    %210 = vxpose.xlu0.b32.cont [2/16] 0.0, 128
    %211 = vxpose.xlu0.b32.cont [3/16] 0.0, 128
    %212 = vxpose.xlu0.b32.cont [4/16] 0.0, 128
    %213 = vxpose.xlu0.b32.cont [5/16] 0.0, 128
    %214 = vxpose.xlu0.b32.cont [6/16] 0.0, 128
    %215 = vxpose.xlu0.b32.cont [7/16] 0.0, 128
    %216 = vxpose.xlu0.b32.cont [8/16] 0.0, 128
    %217 = vxpose.xlu0.b32.cont [9/16] 0.0, 128
    %218 = vxpose.xlu0.b32.cont [10/16] 0.0, 128
    %219 = vxpose.xlu0.b32.cont [11/16] 0.0, 128
    %220 = vxpose.xlu0.b32.cont [12/16] 0.0, 128
    %221 = vxpose.xlu0.b32.cont [13/16] 0.0, 128
    %222 = vxpose.xlu0.b32.cont [14/16] 0.0, 128
    %223 = vxpose.xlu0.b32.cont [15/16] 0.0, 128
    %224 = vxpose.xlu0.b32.end [16/16] 0.0, 128
    %v225 = vpop.trf.xlu0
    %v226 = vpop.trf.xlu0
    %v227 = vpop.trf.xlu0
    %v228 = vpop.trf.xlu0
    %v229 = vpop.trf.xlu0
    %v230 = vpop.trf.xlu0
    %v231 = vpop.trf.xlu0
    %v232 = vpop.trf.xlu0
    %v233 = vpop.trf.xlu0
    %v234 = vpop.trf.xlu0
    %v235 = vpop.trf.xlu0
    %v236 = vpop.trf.xlu0
    %v237 = vpop.trf.xlu0
    %v238 = vpop.trf.xlu0
    %v239 = vpop.trf.xlu0
    %v240 = vpop.trf.xlu0
    %vm241 = vcmask 31744
    %v243 = vsel %vm241, %v225, 0
    %v246 = vsel %vm201, %v93, 0
    %248 = vmatprep.subr.mxu0 0.0
    %249 = vmatpush1.msra.mxu0 0.0
    %250 = vmatprep.subr.mxu0 0.0
    %251 = vmatpush1.msra.mxu0 0.0
    %252 = vmatprep.subr.mxu0 0.0
    %253 = vmatpush1.msra.mxu0 0.0
    %254 = vmatprep.subr.mxu0 0.0
    %255 = vmatpush1.msra.mxu0 0.0
    %256 = vmatprep.subr.mxu0 0.0
    %257 = vmatpush1.msra.mxu0 0.0
    %258 = vmatprep.subr.mxu0 0.0
    %259 = vmatpush1.msra.mxu0 0.0
    %260 = vmatprep.subr.mxu0 0.0
    %261 = vmatpush1.msra.mxu0 0.0
    %262 = vmatprep.subr.mxu0 0.0
    %263 = vmatpush1.msra.mxu0 0.0
    %264 = vmatprep.subr.mxu0 0.0
    %265 = vmatpush1.msra.mxu0 0.0
    %266 = vmatprep.subr.mxu0 0.0
    %267 = vmatpush1.msra.mxu0 0.0
    %268 = vmatprep.subr.mxu0 0.0
    %269 = vmatpush1.msra.mxu0 0.0
    %270 = vmatprep.subr.mxu0 0.0
    %271 = vmatpush1.msra.mxu0 0.0
    %272 = vmatprep.subr.mxu0 0.0
    %273 = vmatpush1.msra.mxu0 0.0
    %274 = vmatprep.subr.mxu0 0.0
    %275 = vmatpush1.msra.mxu0 0.0
    %276 = vmatprep.subr.mxu0 0.0
    %277 = vmatpush1.msra.mxu0 0.0
    %278 = vmatprep.subr.mxu0 0.0
    %279 = vmatpush1.msra.mxu0 %v246
    %280 = vmatprep.subr.mxu0 0.0
    %281 = vmatpush2.msra.mxu0 0.0
    %282 = vmatprep.subr.mxu0 0.0
    %283 = vmatpush2.msra.mxu0 0.0
    %284 = vmatprep.subr.mxu0 0.0
    %285 = vmatpush2.msra.mxu0 0.0
    %286 = vmatprep.subr.mxu0 0.0
    %287 = vmatpush2.msra.mxu0 0.0
    %288 = vmatprep.subr.mxu0 0.0
    %289 = vmatpush2.msra.mxu0 0.0
    %290 = vmatprep.subr.mxu0 0.0
    %291 = vmatpush2.msra.mxu0 0.0
    %292 = vmatprep.subr.mxu0 0.0
    %293 = vmatpush2.msra.mxu0 0.0
    %294 = vmatprep.subr.mxu0 0.0
    %295 = vmatpush2.msra.mxu0 0.0
    %296 = vmatprep.subr.mxu0 0.0
    %297 = vmatpush2.msra.mxu0 0.0
    %298 = vmatprep.subr.mxu0 0.0
    %299 = vmatpush2.msra.mxu0 0.0
    %300 = vmatprep.subr.mxu0 0.0
    %301 = vmatpush2.msra.mxu0 0.0
    %302 = vmatprep.subr.mxu0 0.0
    %303 = vmatpush2.msra.mxu0 0.0
    %304 = vmatprep.subr.mxu0 0.0
    %305 = vmatpush2.msra.mxu0 0.0
    %306 = vmatprep.subr.mxu0 0.0
    %307 = vmatpush2.msra.mxu0 0.0
    %308 = vmatprep.subr.mxu0 0.0
    %309 = vmatpush2.msra.mxu0 0.0
    %310 = vmatprep.subr.mxu0 0.0
    %311 = vmatpush2.msra.mxu0 0.0
    %312 = vmatprep.mubr.f32.mxu0 0.0
    %313 = vmatmul.mubr.f32.gmra.mxu0 %v243
    %v314 = vpop.f32.mrf.mxu0
    %v315 = vadd.f32 0.0, %v314
    %v316 = vpop.f32.mrf.mxu0
    %317 = vdwg.mxu0
    %v318 = vsub.f32 %v188, %v315
    %v319 = vmul.f32 %v318, 1.442695
    %v320 = vpow.pop %v319
    %v321 = vlaneseq
    %v322 = vshrl.u32 %v321, 7
    %v323 = vsub.s32 0, %v322
    %v324 = vrot.slane %v320, %v323
    %v325 = vmul.f32 %v93, %v324
    %v326 = vsel %vm201, %v325, 0.0
    %327 = vadd.xlane.f32.xlu0 %v326
    %v328 = vpop.xlane.xlu0 %327
    %vm329 = vcmask 3072
    %330 = vst.msk [vmem:[%s8] sm:$0xf] %vm329, %v205
    %v331 = vmul.f32 %v195, %v208
    %v332 = vadd.f32 %v331, %v328
    %333 = vst.msk [vmem:[%s9] sm:$0xf] %vm329, %v332
    %v334 = vld [vmem:[#allocation6] sm:$0xf]
    %v335 = vld [vmem:[#allocation6 + $0x4] sm:$0xf]
    %v336 = vld [vmem:[#allocation6 + $0x8] sm:$0xf]
    %v337 = vld [vmem:[#allocation6 + $0xc] sm:$0xf]
    %v338 = vld [vmem:[#allocation6 + $0x10] sm:$0xf]
    %v339 = vld [vmem:[#allocation6 + $0x14] sm:$0xf]
    %v340 = vld [vmem:[#allocation6 + $0x18] sm:$0xf]
    %v341 = vld [vmem:[#allocation6 + $0x1c] sm:$0xf]
    %v342 = vld [vmem:[#allocation6 + $0x20] sm:$0xf]
    %v343 = vld [vmem:[#allocation6 + $0x24] sm:$0xf]
    %v344 = vld [vmem:[#allocation6 + $0x28] sm:$0xf]
    %v345 = vld [vmem:[#allocation6 + $0x2c] sm:$0xf]
    %v346 = vld [vmem:[#allocation6 + $0x30] sm:$0xf]
    %v347 = vld [vmem:[#allocation6 + $0x34] sm:$0xf]
    %v348 = vld [vmem:[#allocation6 + $0x38] sm:$0xf]
    %v349 = vld [vmem:[#allocation6 + $0x3c] sm:$0xf]
    %v350 = vld [vmem:[%s5] sm:$0x1]
    %v352 = vlaneseq
    %v353 = vshrl.u32 %v352, 7
    %v354 = vsub.s32 0, %v353
    %v355 = vrot.slane %v350, %v354
    %v373 = vunpack.c.l.b16 %v334
    %v374 = vunpack.c.l.b16 %v335
    %v375 = vunpack.c.l.b16 %v336
    %v376 = vunpack.c.l.b16 %v337
    %v377 = vunpack.c.l.b16 %v338
    %v378 = vunpack.c.l.b16 %v339
    %v379 = vunpack.c.l.b16 %v340
    %v380 = vunpack.c.l.b16 %v341
    %v381 = vunpack.c.l.b16 %v342
    %v382 = vunpack.c.l.b16 %v343
    %v383 = vunpack.c.l.b16 %v344
    %v384 = vunpack.c.l.b16 %v345
    %v385 = vunpack.c.l.b16 %v346
    %v386 = vunpack.c.l.b16 %v347
    %v387 = vunpack.c.l.b16 %v348
    %v388 = vunpack.c.l.b16 %v349
    %v389 = vpack.c.b16 %v374, %v373
    %v390 = vpack.c.b16 %v376, %v375
    %v391 = vpack.c.b16 %v378, %v377
    %v392 = vpack.c.b16 %v380, %v379
    %v393 = vpack.c.b16 %v382, %v381
    %v394 = vpack.c.b16 %v384, %v383
    %v395 = vpack.c.b16 %v386, %v385
    %v396 = vpack.c.b16 %v388, %v387
    %405 = vmatprep.subr.bf16.mxu0 0
    %406 = vmatpush1.bf16.msra.mxu0 %v396
    %407 = vmatprep.subr.bf16.mxu0 0
    %408 = vmatpush1.bf16.msra.mxu0 %v395
    %409 = vmatprep.subr.bf16.mxu0 0
    %410 = vmatpush1.bf16.msra.mxu0 %v394
    %411 = vmatprep.subr.bf16.mxu0 0
    %412 = vmatpush1.bf16.msra.mxu0 %v393
    %413 = vmatprep.subr.bf16.mxu0 0
    %414 = vmatpush1.bf16.msra.mxu0 %v392
    %415 = vmatprep.subr.bf16.mxu0 0
    %416 = vmatpush1.bf16.msra.mxu0 %v391
    %417 = vmatprep.subr.bf16.mxu0 0
    %418 = vmatpush1.bf16.msra.mxu0 %v390
    %419 = vmatprep.subr.bf16.mxu0 0
    %420 = vmatpush1.bf16.msra.mxu0 %v389
    %421 = vmatprep.subr.bf16.mxu0 0
    %422 = vmatpush2.bf16.msra.mxu0 0
    %423 = vmatprep.subr.bf16.mxu0 0
    %424 = vmatpush2.bf16.msra.mxu0 0
    %425 = vmatprep.subr.bf16.mxu0 0
    %426 = vmatpush2.bf16.msra.mxu0 0
    %427 = vmatprep.subr.bf16.mxu0 0
    %428 = vmatpush2.bf16.msra.mxu0 0
    %429 = vmatprep.subr.bf16.mxu0 0
    %430 = vmatpush2.bf16.msra.mxu0 0
    %431 = vmatprep.subr.bf16.mxu0 0
    %432 = vmatpush2.bf16.msra.mxu0 0
    %433 = vmatprep.subr.bf16.mxu0 0
    %434 = vmatpush2.bf16.msra.mxu0 0
    %435 = vmatprep.subr.bf16.mxu0 0
    %436 = vmatpush2.bf16.msra.mxu0 0
    %437 = vmatprep.mubr.bf16.mxu0 0
    %438 = vmatmul.mubr.bf16.gmra.mxu0 %v137
    %v439 = vpop.f32.mrf.mxu0
    %v440 = vadd.f32 %v355, %v439
    %v441 = vpop.f32.mrf.mxu0
    %v442 = vpop.f32.mrf.mxu0
    %v443 = vadd.f32 %v355, %v442
    %v444 = vpop.f32.mrf.mxu0
    %445 = vmatprep.mubr.bf16.mxu0 0
    %446 = vmatmul.mubr.bf16.gmra.mxu0 %v138
    %v447 = vpop.f32.mrf.mxu0
    %v448 = vadd.f32 %v355, %v447
    %v449 = vpop.f32.mrf.mxu0
    %v450 = vpop.f32.mrf.mxu0
    %v451 = vadd.f32 %v355, %v450
    %v452 = vpop.f32.mrf.mxu0
    %453 = vmatprep.mubr.bf16.mxu0 0
    %454 = vmatmul.mubr.bf16.gmra.mxu0 %v139
    %v455 = vpop.f32.mrf.mxu0
    %v456 = vadd.f32 %v355, %v455
    %v457 = vpop.f32.mrf.mxu0
    %v458 = vpop.f32.mrf.mxu0
    %v459 = vadd.f32 %v355, %v458
    %v460 = vpop.f32.mrf.mxu0
    %461 = vmatprep.mubr.bf16.mxu0 0
    %462 = vmatmul.mubr.bf16.gmra.mxu0 %v140
    %v463 = vpop.f32.mrf.mxu0
    %v464 = vadd.f32 %v355, %v463
    %v465 = vpop.f32.mrf.mxu0
    %v466 = vpop.f32.mrf.mxu0
    %v467 = vadd.f32 %v355, %v466
    %v468 = vpop.f32.mrf.mxu0
    %469 = vmatprep.mubr.bf16.mxu0 0
    %470 = vmatmul.mubr.bf16.gmra.mxu0 %v141
    %v471 = vpop.f32.mrf.mxu0
    %v472 = vadd.f32 %v355, %v471
    %v473 = vpop.f32.mrf.mxu0
    %v474 = vpop.f32.mrf.mxu0
    %v475 = vadd.f32 %v355, %v474
    %v476 = vpop.f32.mrf.mxu0
    %477 = vmatprep.mubr.bf16.mxu0 0
    %478 = vmatmul.mubr.bf16.gmra.mxu0 %v142
    %v479 = vpop.f32.mrf.mxu0
    %v480 = vadd.f32 %v355, %v479
    %v481 = vpop.f32.mrf.mxu0
    %v482 = vpop.f32.mrf.mxu0
    %v483 = vadd.f32 %v355, %v482
    %v484 = vpop.f32.mrf.mxu0
    %485 = vmatprep.mubr.bf16.mxu0 0
    %486 = vmatmul.mubr.bf16.gmra.mxu0 %v143
    %v487 = vpop.f32.mrf.mxu0
    %v488 = vadd.f32 %v355, %v487
    %v489 = vpop.f32.mrf.mxu0
    %v490 = vpop.f32.mrf.mxu0
    %v491 = vadd.f32 %v355, %v490
    %v492 = vpop.f32.mrf.mxu0
    %493 = vmatprep.mubr.bf16.mxu0 0
    %494 = vmatmul.mubr.bf16.gmra.mxu0 %v144
    %v495 = vpop.f32.mrf.mxu0
    %v496 = vadd.f32 %v355, %v495
    %v497 = vpop.f32.mrf.mxu0
    %v498 = vpop.f32.mrf.mxu0
    %v499 = vadd.f32 %v355, %v498
    %v500 = vpop.f32.mrf.mxu0
    %501 = vdwg.mxu0
    %v502 = vpack.c.bf16 %v325, %v325
    %v503 = vpack.c.bf16 %v443, %v440
    %v504 = vpack.c.bf16 %v451, %v448
    %v505 = vpack.c.bf16 %v459, %v456
    %v506 = vpack.c.bf16 %v467, %v464
    %v507 = vpack.c.bf16 %v475, %v472
    %v508 = vpack.c.bf16 %v483, %v480
    %v509 = vpack.c.bf16 %v491, %v488
    %v510 = vpack.c.bf16 %v499, %v496
    %511 = vmatprep.subr.bf16.mxu0 0
    %512 = vmatpush1.bf16.msra.mxu0 %v510
    %513 = vmatprep.subr.bf16.mxu0 0
    %514 = vmatpush1.bf16.msra.mxu0 %v509
    %515 = vmatprep.subr.bf16.mxu0 0
    %516 = vmatpush1.bf16.msra.mxu0 %v508
    %517 = vmatprep.subr.bf16.mxu0 0
    %518 = vmatpush1.bf16.msra.mxu0 %v507
    %519 = vmatprep.subr.bf16.mxu0 0
    %520 = vmatpush1.bf16.msra.mxu0 %v506
    %521 = vmatprep.subr.bf16.mxu0 0
    %522 = vmatpush1.bf16.msra.mxu0 %v505
    %523 = vmatprep.subr.bf16.mxu0 0
    %524 = vmatpush1.bf16.msra.mxu0 %v504
    %525 = vmatprep.subr.bf16.mxu0 0
    %526 = vmatpush1.bf16.msra.mxu0 %v503
    %527 = vmatprep.subr.bf16.mxu0 0
    %528 = vmatpush2.bf16.msra.mxu0 0
    %529 = vmatprep.subr.bf16.mxu0 0
    %530 = vmatpush2.bf16.msra.mxu0 0
    %531 = vmatprep.subr.bf16.mxu0 0
    %532 = vmatpush2.bf16.msra.mxu0 0
    %533 = vmatprep.subr.bf16.mxu0 0
    %534 = vmatpush2.bf16.msra.mxu0 0
    %535 = vmatprep.subr.bf16.mxu0 0
    %536 = vmatpush2.bf16.msra.mxu0 0
    %537 = vmatprep.subr.bf16.mxu0 0
    %538 = vmatpush2.bf16.msra.mxu0 0
    %539 = vmatprep.subr.bf16.mxu0 0
    %540 = vmatpush2.bf16.msra.mxu0 0
    %541 = vmatprep.subr.bf16.mxu0 0
    %542 = vmatpush2.bf16.msra.mxu0 0
    %543 = vmatprep.mubr.bf16.mxu0 0
    %544 = vmatmul.mubr.bf16.gmra.mxu0 %v502
    %v545 = vpop.f32.mrf.mxu0
    %v546 = vadd.f32 0.0, %v545
    %v547 = vpop.f32.mrf.mxu0
    %v548 = vpop.f32.mrf.mxu0
    %v549 = vpop.f32.mrf.mxu0
    %550 = vdwg.mxu0
    %v551 = vld [vmem:[#allocation8] sm:$0xf]
    %553 = vset.pattern.permute.xlu0 0
    %554 = vperm.xlu0 %553, %v208
    %v555 = vpop.permute.xlu0 %554
    %v557 = vmul.f32 %v551, %v555
    %v558 = vadd.f32 %v557, %v546
    %559 = vst [vmem:[#allocation8] sm:$0xf] %v558
    // Predicated region
    $region38: #{tpu_custom_call.1} parent=1 // pred_check
      %p560 = pneg %p60
    $region39: #{tpu_custom_call.1} parent=1 // pred_check_branch
      %562 = sbr.rel (%p560) target = $region41
    $region40: #{tpu_custom_call.1} parent=1 // pred_region
      %v563 = vld [vmem:[%s9] sm:$0xf]
      %v564 = vadd.f32 %v563, 1e-16
      %v565 = vrcp.pop %v564
      %v566 = vmul.f32 %v564, %v565
      %v567 = vsub.f32 2.0, %v566
      %v568 = vmul.f32 %v565, %v567
      %v569 = vld [vmem:[#allocation8] sm:$0xf]
      %571 = vset.pattern.permute.xlu0 0
      %572 = vperm.xlu0 %571, %v568
      %v573 = vpop.permute.xlu0 %572
      %v575 = vmul.f32 %v569, %v573
      %576 = vst [vmem:[#allocation8] sm:$0xf] %v575
    $region41: #{tpu_custom_call.1} parent=1 // pred_fallthru
      _
    // Predicated region
    $region42: #{tpu_custom_call.1} parent=1 // pred_check
      _
    $region43: #{tpu_custom_call.1} parent=1 // pred_check_branch
      %578 = sbr.rel (0) target = $region45
    $region44: #{tpu_custom_call.1} parent=1 // pred_region
      %s580 = ssub.s32 64, 64
      %581 = vsyncadd [#allocation5], %s580
      %s583 = sshll.u32 [#allocation8], 4
      %s584 = int_to_ptr.vmem [resolvable:$true] %s583
      %586 = dma.vmem_to_hbm [thread:$0]  %s584, 64, %s6, [#allocation5]
    $region45: #{tpu_custom_call.1} parent=1 // pred_fallthru
      _
    // Predicated region
    $region46: #{tpu_custom_call.1} parent=1 // pred_check
      _
    $region47: #{tpu_custom_call.1} parent=1 // pred_check_branch
      %588 = sbr.rel (0) target = $region49
    $region48: #{tpu_custom_call.1} parent=1 // pred_region
      %s590 = ssub.s32 16, 16
      %591 = vsyncadd [#allocation10], %s590
      %s593 = sshll.u32 [#allocation9], 4
      %s594 = int_to_ptr.vmem [resolvable:$true] %s593
      %596 = dma.vmem_to_hbm [thread:$0]  %s594, 16, %s7, [#allocation10]
    $region49: #{tpu_custom_call.1} parent=1 // pred_fallthru
      _
    // Predicated region
    $region50: #{tpu_custom_call.1} parent=1 // pred_check
      _
    $region51: #{tpu_custom_call.1} parent=1 // pred_check_branch
      %598 = sbr.rel (0) target = $region53
    $region52: #{tpu_custom_call.1} parent=1 // pred_region
      _
    $region53: #{tpu_custom_call.1} parent=1 // pred_fallthru
      _
    // Predicated region
    $region54: #{tpu_custom_call.1} parent=1 // pred_check
      _
    $region55: #{tpu_custom_call.1} parent=1 // pred_check_branch
      %600 = sbr.rel (0) target = $region57
    $region56: #{tpu_custom_call.1} parent=1 // pred_region
      _
    $region57: #{tpu_custom_call.1} parent=1 // pred_fallthru
      _
    // Predicated region
    $region58: #{tpu_custom_call.1} parent=1 // pred_check
      _
    $region59: #{tpu_custom_call.1} parent=1 // pred_check_branch
      %602 = sbr.rel (0) target = $region61
    $region60: #{tpu_custom_call.1} parent=1 // pred_region
      %603 = dma.done [#allocation5], 64
    $region61: #{tpu_custom_call.1} parent=1 // pred_fallthru
      _
    // Predicated region
    $region62: #{tpu_custom_call.1} parent=1 // pred_check
      _
    $region63: #{tpu_custom_call.1} parent=1 // pred_check_branch
      %605 = sbr.rel (0) target = $region65
    $region64: #{tpu_custom_call.1} parent=1 // pred_region
      %606 = dma.done [#allocation10], 16
    $region65: #{tpu_custom_call.1} parent=1 // pred_fallthru
      _
    // Predicated region
    $region66: #{tpu_custom_call.1} parent=1 // pred_check
      _
    $region67: #{tpu_custom_call.1} parent=1 // pred_check_branch
      %608 = sbr.rel (0) target = $region69
    $region68: #{tpu_custom_call.1} parent=1 // pred_region
      _
    $region69: #{tpu_custom_call.1} parent=1 // pred_fallthru
      _
    // Predicated region
    $region70: #{tpu_custom_call.1} parent=1 // pred_check
      _
    $region71: #{tpu_custom_call.1} parent=1 // pred_check_branch
      %610 = sbr.rel (0) target = $region73
    $region72: #{tpu_custom_call.1} parent=1 // pred_region
      _
    $region73: #{tpu_custom_call.1} parent=1 // pred_fallthru
      _
    %611 = vsyncpa [#allocation4], 1
    %612 = vsyncpa [#allocation7], 1
    %613 = vsyncpa [#allocation5], 1
    %614 = vsyncpa [#allocation10], 1

</llo_original>
